<compile_context>
chip_gen: v5e
topology: v5e:2x2
jax: 0.10.0
libtpu: 0.0.40
codegen_flags: <defaults>
</compile_context>

<pallas_src>
import jax
import jax.numpy as jnp
from jax import lax
from jax.experimental import pallas as pl
from jax.experimental.pallas import tpu as pltpu

_BIG = 1e30  # "infinitely far" squared distance for padded candidate rows


def _knn2_ratio_kernel(a_ref, q_ref, out_ref, m1_ref, m2_ref):
    """One (query tile, candidate chunk) step of the squared 2-NN search.

    a_ref : (1, TC, D+2) candidate chunk, rows [x_c, ||x_c||^2, 1]
    q_ref : (1, TM, D+2) query tile,      rows [-2*x_q, 1, ||x_q||^2]
    out_ref: (1, 1, TM)  squared ratio (d2/d1)^2, written on the last chunk
    m1_ref/m2_ref: (1, TM) running nearest / second-nearest squared distance
    """
    i = pl.program_id(1)              # query-tile index
    c = pl.program_id(2)              # candidate-chunk index (reduction axis)
    nc = pl.num_programs(2)
    TC = a_ref.shape[1]
    TM = q_ref.shape[1]
    inf = jnp.float32(jnp.inf)

    @pl.when(c == 0)
    def _():
        m1_ref[...] = jnp.full_like(m1_ref, inf)
        m2_ref[...] = jnp.full_like(m2_ref, inf)

    # d2[r, q] = ||x_r||^2 + ||x_q||^2 - 2 x_r.x_q, entirely on the MXU:
    # both norm terms ride along as extra contraction columns.
    d2 = lax.dot_general(a_ref[0], q_ref[0], (((1,), (1,)), ((), ())),
                         preferred_element_type=jnp.float32)          # (TC, TM)

    # Self-mask (candidate global index == query global index) from
    # broadcast-shaped iotas; no full (TC, TM) int32 tensors materialized.
    cand = c * TC + lax.broadcasted_iota(jnp.int32, (TC, 1), 0)
    qry = i * TM + lax.broadcasted_iota(jnp.int32, (1, TM), 1)
    d2 = jnp.where(cand == qry, inf, d2)

    # Two smallest squared distances within this chunk (tie-correct).
    c1 = jnp.min(d2, axis=0, keepdims=True)                            # (1, TM)
    is_min = d2 == c1
    ties = jnp.sum(is_min.astype(jnp.float32), axis=0, keepdims=True)
    c2_distinct = jnp.min(jnp.where(is_min, inf, d2), axis=0, keepdims=True)
    c2 = jnp.where(ties > 1.5, c1, c2_distinct)

    # Merge into the running accumulators (multiset-correct two-smallest merge).
    m1 = m1_ref[...]
    m2 = m2_ref[...]
    new_m1 = jnp.minimum(m1, c1)
    new_m2 = jnp.minimum(jnp.maximum(m1, c1), jnp.minimum(m2, c2))
    m1_ref[...] = new_m1
    m2_ref[...] = new_m2

    @pl.when(c == nc - 1)
    def _():
        d1 = jnp.maximum(new_m1, 0.0)     # clamp fp cancellation on (1,TM) only
        d2nd = jnp.maximum(new_m2, 0.0)
        # TODO(synk): exact duplicate points give d1~0 -> huge finite ratio,
        # whereas the PyTorch reference yields inf/nan; divergent only for
        # degenerate inputs.
        out_ref[0] = d2nd / jnp.maximum(d1, jnp.float32(1e-30))


def _twonn_reduce_kernel(r_ref, y_ref, out_ref):
    """TwoNN regression on sorted squared ratios r = (d2/d1)^2 for one batch:
    x = log(d2/d1) = 0.5*log(r)  =>  sum(x*y)/sum(x*x) = 2*sum(u*y)/sum(u*u)."""
    u = jnp.log(r_ref[0])                                   # (1, N)
    y = y_ref[0]                                            # (1, N)
    num = jnp.sum(u * y, axis=-1, keepdims=True)
    den = jnp.sum(u * u, axis=-1, keepdims=True)
    out_ref[0] = 2.0 * num / den


def _round_up(n, m):
    return ((n + m - 1) // m) * m


def _knn2_ratio(X, *, tm=None, tc=None):
    """Squared 2-NN ratio (d2/d1)^2 per point, shape (B, N)."""
    B, N, D = X.shape
    Np = _round_up(N, 128)

    # Tile sizes: query-tile TM (output lanes), candidate chunk TC.  Kept
    # modest so per-step VMEM (~ a few MiB) fits every generation incl. v7x.
    if tm is None:
        tm = 256 if Np % 256 == 0 else 128
    if tc is None:
        tc = 512 if Np % 512 == 0 else (256 if Np % 256 == 0 else 128)
    tm = min(tm, Np)
    tc = min(tc, Np)

    # Mean-center per batch: pairwise distances are invariant, but the Gram
    # trick stays well conditioned in fp32.
    Xc = X - jnp.mean(X, axis=1, keepdims=True)
    Xp = jnp.pad(Xc, ((0, 0), (0, Np - N), (0, 0)))

    n2 = jnp.sum(Xp * Xp, axis=-1, keepdims=True)                     # (B, Np, 1)
    ones = jnp.ones_like(n2)
    pad_row = (jnp.arange(Np) >= N)[None, :, None]
    n2_cand = jnp.where(pad_row, jnp.float32(_BIG), n2)   # pads never selected

    # Augmented MXU operands: A.Q^T == squared pairwise distance.
    A = jnp.concatenate([Xp, n2_cand, ones], axis=-1)                 # (B,Np,D+2)
    Q = jnp.concatenate([-2.0 * Xp, ones, n2], axis=-1)               # (B,Np,D+2)
    DA = D + 2

    r = pl.pallas_call(
        _knn2_ratio_kernel,
        out_shape=jax.ShapeDtypeStruct((B, 1, Np), jnp.float32),
        grid_spec=pltpu.PrefetchScalarGridSpec(
            num_scalar_prefetch=0,
            grid=(B, Np // tm, Np // tc),
            in_specs=[
                pl.BlockSpec((1, tc, DA), lambda b, i, c: (b, c, 0)),   # candidates
                pl.BlockSpec((1, tm, DA), lambda b, i, c: (b, i, 0)),   # queries
            ],
            out_specs=pl.BlockSpec((1, 1, tm), lambda b, i, c: (b, 0, i)),
            scratch_shapes=[pltpu.VMEM((1, tm), jnp.float32),           # running m1
                            pltpu.VMEM((1, tm), jnp.float32)],          # running m2
        ),
        compiler_params=pltpu.CompilerParams(
            dimension_semantics=("parallel", "parallel", "arbitrary")),
        cost_estimate=pl.CostEstimate(
            flops=2 * B * Np * Np * DA + 10 * B * Np * Np,
            transcendentals=0,
            bytes_accessed=4 * (B * (Np // tm) * Np * DA + B * Np * DA + B * Np)),
    )(A, Q)
    return r[:, 0, :N]          # drop padded query columns


def dimension_two_nn(X):
    """Equivalent of Dimension(k=2, method='two_nn').forward(X) for X:(B,N,D)."""
    X = X.astype(jnp.float32)
    B, N, _ = X.shape
    r2 = _knn2_ratio(X)                             # Pallas kernel 1: (d2/d1)^2
    # TODO(synk): no clean Pallas/Mosaic sort; jnp.sort between the kernels.
    r2_sorted = jnp.sort(r2, axis=-1)
    y = -jnp.log(1.0 - jnp.linspace(0.0, 1.0 - 1.0 / N, N, dtype=jnp.float32))
    out = pl.pallas_call(                           # Pallas kernel 2: regression
        _twonn_reduce_kernel,
        out_shape=jax.ShapeDtypeStruct((B, 1, 1), jnp.float32),
        grid_spec=pltpu.PrefetchScalarGridSpec(
            num_scalar_prefetch=0,
            grid=(B,),
            in_specs=[pl.BlockSpec((1, 1, N), lambda b: (b, 0, 0)),
                      pl.BlockSpec((1, 1, N), lambda b: (0, 0, 0))],
            out_specs=pl.BlockSpec((1, 1, 1), lambda b: (b, 0, 0)),
        ),
        compiler_params=pltpu.CompilerParams(dimension_semantics=("parallel",)),
    )(r2_sorted[:, None, :], y[None, None, :])
    return out[:, 0, 0]


def _reference_two_nn(X):
    """Pure-JAX reference mirroring the PyTorch module."""
    B, N, _ = X.shape
    diff = X[:, :, None, :] - X[:, None, :, :]
    dm = jnp.sqrt(jnp.sum(diff * diff, axis=-1))
    dm = jnp.where(jnp.eye(N, dtype=bool)[None], jnp.inf, dm)
    ds = jnp.sort(dm, axis=-1)
    d1, d2 = ds[:, :, 0], ds[:, :, 1]
    x = jnp.log(jnp.sort(d2 / d1, axis=-1))
    y = -jnp.log(1.0 - jnp.linspace(0.0, 1.0 - 1.0 / N, N))
    return jnp.sum(x * y, axis=-1) / jnp.sum(x * x, axis=-1)


if __name__ == "__main__":
    key = jax.random.PRNGKey(0)

    # Main check: N a multiple of 128 (regular grid path).
    B, N, D = 2, 128, 8
    X = jax.random.normal(key, (B, N, D), dtype=jnp.float32)
    est = jax.block_until_ready(dimension_two_nn(X))
    ref = jax.block_until_ready(_reference_two_nn(X))
    assert est.shape == (B,)
    assert bool(jnp.all(jnp.isfinite(est)))
    assert jnp.allclose(est, ref, rtol=1e-2, atol=1e-2), (est, ref)

    # Padding path: N not a multiple of 128 (padded candidates masked out).
    Xo = jax.random.normal(jax.random.PRNGKey(1), (2, 96, 8), dtype=jnp.float32)
    est2 = jax.block_until_ready(dimension_two_nn(Xo))
    ref2 = jax.block_until_ready(_reference_two_nn(Xo))
    assert jnp.allclose(est2, ref2, rtol=1e-2, atol=1e-2), (est2, ref2)

    print("KERNEL_OK")
</pallas_src>

<mosaic_0001>
module attributes {stable_mosaic.version = 11 : i64} {
  func.func @_knn2_ratio_kernel(%arg0: i32, %arg1: i32, %arg2: i32, %arg3: memref<1x128x10xf32, #tpu.memory_space<vmem>>, %arg4: memref<1x128x10xf32, #tpu.memory_space<vmem>>, %arg5: memref<1x1x128xf32, #tpu.memory_space<vmem>>, %arg6: memref<1x128xf32, #tpu.memory_space<vmem>>, %arg7: memref<1x128xf32, #tpu.memory_space<vmem>>) attributes {dimension_semantics = [#tpu.dimension_semantics<parallel>, #tpu.dimension_semantics<parallel>, #tpu.dimension_semantics<arbitrary>], iteration_bounds = array<i64: 2, 1, 1>, scalar_prefetch = 0 : i64, scratch_operands = 2 : i64, tpu.core_type = #tpu.core_type<tc>, window_params = [{transform_indices = @transform_0, window_bounds = array<i64: 1, 128, 10>}, {transform_indices = @transform_1, window_bounds = array<i64: 1, 128, 10>}, {transform_indices = @transform_2, window_bounds = array<i64: 1, 1, 128>}]} {
    %c0_i32 = arith.constant 0 : i32
    %0 = arith.cmpi eq, %arg2, %c0_i32 : i32
    %1 = arith.extui %0 : i1 to i32
    %cst = arith.constant 0x7F800000 : f32
    %c0_i32_0 = arith.constant 0 : i32
    %2 = arith.cmpi ne, %1, %c0_i32_0 : i32
    scf.if %2 {
      %47 = vector.broadcast %cst : f32 to vector<1x128xf32>
      %c0_24 = arith.constant 0 : index
      %c0_25 = arith.constant 0 : index
      %48 = vector.load %arg6[%c0_24, %c0_25] : memref<1x128xf32, #tpu.memory_space<vmem>>, vector<1x128xf32>
      tpu.vector_store %arg6[%c0_24, %c0_25], %47 {strides = array<i32>} : memref<1x128xf32, #tpu.memory_space<vmem>>, vector<1x128xf32>,
      %49 = vector.broadcast %cst : f32 to vector<1x128xf32>
      %c0_26 = arith.constant 0 : index
      %c0_27 = arith.constant 0 : index
      %50 = vector.load %arg7[%c0_26, %c0_27] : memref<1x128xf32, #tpu.memory_space<vmem>>, vector<1x128xf32>
      tpu.vector_store %arg7[%c0_26, %c0_27], %49 {strides = array<i32>} : memref<1x128xf32, #tpu.memory_space<vmem>>, vector<1x128xf32>,
    } else {
    }
    %c0 = arith.constant 0 : index
    %c0_1 = arith.constant 0 : index
    %c0_2 = arith.constant 0 : index
    %3 = vector.load %arg3[%c0, %c0_1, %c0_2] : memref<1x128x10xf32, #tpu.memory_space<vmem>>, vector<1x128x10xf32>
    %4 = vector.shape_cast %3 : vector<1x128x10xf32> to vector<128x10xf32>
    %c0_3 = arith.constant 0 : index
    %c0_4 = arith.constant 0 : index
    %c0_5 = arith.constant 0 : index
    %5 = vector.load %arg4[%c0_3, %c0_4, %c0_5] : memref<1x128x10xf32, #tpu.memory_space<vmem>>, vector<1x128x10xf32>
    %6 = vector.shape_cast %5 : vector<1x128x10xf32> to vector<128x10xf32>
    %cst_6 = arith.constant dense<0.000000e+00> : vector<128x128xf32>
    %7 = tpu.matmul %4, %6, %cst_6 {dimension_numbers = #tpu.dot_dimension_numbers<[1], [1], [0], [0], [0, 0, 1, 0], [], []>} : vector<128x10xf32>, vector<128x10xf32>, vector<128x128xf32> -> vector<128x128xf32>
    %c128_i32 = arith.constant 128 : i32
    %8 = arith.muli %arg2, %c128_i32 : i32
    %9 = tpu.iota {dimensions = array<i32: 0>} : vector<128x1xi32>
    %10 = vector.broadcast %8 : i32 to vector<128x1xi32>
    %11 = arith.addi %10, %9 : vector<128x1xi32>
    %c128_i32_7 = arith.constant 128 : i32
    %12 = arith.muli %arg1, %c128_i32_7 : i32
    %13 = tpu.iota {dimensions = array<i32: 1>} : vector<1x128xi32>
    %14 = vector.broadcast %12 : i32 to vector<1x128xi32>
    %15 = arith.addi %14, %13 : vector<1x128xi32>
    %16 = vector.broadcast %11 : vector<128x1xi32> to vector<128x128xi32>
    %17 = vector.broadcast %15 : vector<1x128xi32> to vector<128x128xi32>
    %18 = arith.cmpi eq, %16, %17 : vector<128x128xi32>
    %cst_8 = arith.constant 0x7F800000 : f32
    %19 = vector.broadcast %cst_8 : f32 to vector<128x128xf32>
    %20 = arith.select %18, %19, %7 : vector<128x128xi1>, vector<128x128xf32>
    %cst_9 = arith.constant dense<0x7F800000> : vector<128xf32>
    %21 = vector.multi_reduction <minimumf>, %20, %cst_9 [0] : vector<128x128xf32> to vector<128xf32>
    %22 = vector.shape_cast %21 : vector<128xf32> to vector<1x128xf32>
    %23 = vector.broadcast %22 : vector<1x128xf32> to vector<128x128xf32>
    %24 = arith.cmpf oeq, %20, %23 : vector<128x128xf32>
    %25 = arith.extui %24 : vector<128x128xi1> to vector<128x128xi32>
    %26 = arith.sitofp %25 : vector<128x128xi32> to vector<128x128xf32>
    %cst_10 = arith.constant dense<0.000000e+00> : vector<128xf32>
    %27 = vector.multi_reduction <add>, %26, %cst_10 [0] : vector<128x128xf32> to vector<128xf32>
    %28 = vector.shape_cast %27 : vector<128xf32> to vector<1x128xf32>
    %cst_11 = arith.constant 0x7F800000 : f32
    %29 = vector.broadcast %cst_11 : f32 to vector<128x128xf32>
    %30 = arith.select %24, %29, %20 : vector<128x128xi1>, vector<128x128xf32>
    %cst_12 = arith.constant dense<0x7F800000> : vector<128xf32>
    %31 = vector.multi_reduction <minimumf>, %30, %cst_12 [0] : vector<128x128xf32> to vector<128xf32>
    %32 = vector.shape_cast %31 : vector<128xf32> to vector<1x128xf32>
    %cst_13 = arith.constant 1.500000e+00 : f32
    %33 = vector.broadcast %cst_13 : f32 to vector<1x128xf32>
    %34 = arith.cmpf ogt, %28, %33 : vector<1x128xf32>
    %35 = arith.select %34, %22, %32 : vector<1x128xi1>, vector<1x128xf32>
    %c0_14 = arith.constant 0 : index
    %c0_15 = arith.constant 0 : index
    %36 = vector.load %arg6[%c0_14, %c0_15] : memref<1x128xf32, #tpu.memory_space<vmem>>, vector<1x128xf32>
    %c0_16 = arith.constant 0 : index
    %c0_17 = arith.constant 0 : index
    %37 = vector.load %arg7[%c0_16, %c0_17] : memref<1x128xf32, #tpu.memory_space<vmem>>, vector<1x128xf32>
    %38 = arith.minimumf %36, %22 : vector<1x128xf32>
    %39 = arith.maximumf %36, %22 : vector<1x128xf32>
    %40 = arith.minimumf %37, %35 : vector<1x128xf32>
    %41 = arith.minimumf %39, %40 : vector<1x128xf32>
    %c0_18 = arith.constant 0 : index
    %c0_19 = arith.constant 0 : index
    %42 = vector.load %arg6[%c0_18, %c0_19] : memref<1x128xf32, #tpu.memory_space<vmem>>, vector<1x128xf32>
    tpu.vector_store %arg6[%c0_18, %c0_19], %38 {strides = array<i32>} : memref<1x128xf32, #tpu.memory_space<vmem>>, vector<1x128xf32>,
    %c0_20 = arith.constant 0 : index
    %c0_21 = arith.constant 0 : index
    %43 = vector.load %arg7[%c0_20, %c0_21] : memref<1x128xf32, #tpu.memory_space<vmem>>, vector<1x128xf32>
    tpu.vector_store %arg7[%c0_20, %c0_21], %41 {strides = array<i32>} : memref<1x128xf32, #tpu.memory_space<vmem>>, vector<1x128xf32>,
    %c0_i32_22 = arith.constant 0 : i32
    %44 = arith.cmpi eq, %arg2, %c0_i32_22 : i32
    %45 = arith.extui %44 : i1 to i32
    %c0_i32_23 = arith.constant 0 : i32
    %46 = arith.cmpi ne, %45, %c0_i32_23 : i32
    scf.if %46 {
      %cst_24 = arith.constant 0.000000e+00 : f32
      %47 = vector.broadcast %cst_24 : f32 to vector<1x128xf32>
      %48 = arith.maximumf %38, %47 : vector<1x128xf32>
      %cst_25 = arith.constant 0.000000e+00 : f32
      %49 = vector.broadcast %cst_25 : f32 to vector<1x128xf32>
      %50 = arith.maximumf %41, %49 : vector<1x128xf32>
      %cst_26 = arith.constant 1.000000e-30 : f32
      %51 = vector.broadcast %cst_26 : f32 to vector<1x128xf32>
      %52 = arith.maximumf %48, %51 : vector<1x128xf32>
      %53 = arith.divf %50, %52 : vector<1x128xf32>
      %c0_27 = arith.constant 0 : index
      %c0_28 = arith.constant 0 : index
      %c0_29 = arith.constant 0 : index
      %54 = vector.load %arg5[%c0_27, %c0_28, %c0_29] : memref<1x1x128xf32, #tpu.memory_space<vmem>>, vector<1x1x128xf32>
      %55 = vector.shape_cast %54 : vector<1x1x128xf32> to vector<1x128xf32>
      %56 = vector.shape_cast %53 : vector<1x128xf32> to vector<1x1x128xf32>
      tpu.vector_store %arg5[%c0_27, %c0_28, %c0_29], %56 {strides = array<i32>} : memref<1x1x128xf32, #tpu.memory_space<vmem>>, vector<1x1x128xf32>,
    } else {
    }
    return
  }
  func.func @transform_0(%arg0: i32, %arg1: i32, %arg2: i32) -> (i32, i32, i32) {
    %c0_i32 = arith.constant 0 : i32
    %c0_i32_0 = arith.constant 0 : i32
    return %arg0, %arg2, %c0_i32 : i32, i32, i32
  }
  func.func @transform_1(%arg0: i32, %arg1: i32, %arg2: i32) -> (i32, i32, i32) {
    %c0_i32 = arith.constant 0 : i32
    %c0_i32_0 = arith.constant 0 : i32
    return %arg0, %arg1, %c0_i32 : i32, i32, i32
  }
  func.func @transform_2(%arg0: i32, %arg1: i32, %arg2: i32) -> (i32, i32, i32) {
    %c0_i32 = arith.constant 0 : i32
    %c0_i32_0 = arith.constant 0 : i32
    return %arg0, %c0_i32, %arg1 : i32, i32, i32
  }
}

</mosaic_0001>

<llo_original>
// kernel: tpu_custom_call.1
$region0: #{tpu_custom_call.1}
  #allocation0 [shape = 'u32[]', space=smem, size = 0x4, offset = 0x4, fixed_abs, tag = 'smem constant byte address 0x4 - core index']
  #allocation1 [shape = 'u32[72,128]{1,0:T(1,128)}', space=vmem, size = 0x9000, scoped, tag = 'internal scratch']
  #allocation2 [shape = 'f32[1,128]{1,0:T(1,128)}', space=vmem, size = 0x200, scoped, tag = 'scratch operand']
  #allocation3 [shape = 'f32[1,128]{1,0:T(1,128)}', space=vmem, size = 0x200, scoped, tag = 'scratch operand']
  %s0 = inlined_call_operand.vmem [shape: f32[2,128,10], index: 0, kind: input, shape index: {}]
  %s1 = inlined_call_operand.vmem [shape: f32[2,128,10], index: 1, kind: input, shape index: {}]
  %s2 = inlined_call_operand.hbm [shape: f32[2,1,128], index: 2, kind: output, shape index: {}]
  %s3 = sld [smem:[#allocation0]]
  $region49: #{tpu_custom_call.1} parent=0
    _
  %s5 = ssub.s32 1, %s3
  %s6 = scalar_select 0, %s5, %s3
  $region1: #{tpu_custom_call.1} parent=0
    #allocation4 [shape = 'u8[1024]{0}', space=vmem, size = 0x400, scoped, tag = 'output window, operand 0']
    #allocation5 [shape = 's32[2]{0}', space=sflag, size = 0x8, scoped, tag = 'scoped memory for tpu_custom_call.1']
    %7 = vsyncpa [#allocation5], 0
    %s8 = scalar_lea.sflag [#allocation5], 1
    %9 = vsyncpa %s8, 0
    loop: start=0, step=1, limit=4
    $region2: #{tpu_custom_call.1} parent=1 // loop_pre_header
      _
    $region3: #{tpu_custom_call.1} parent=1 // loop_header
      %s11 = sphi 0, %s15
      %p12 = scmp.ge.s32.totalorder %s11, 4
      %s18 = sphi 0, %s37
      %s19 = sphi 0, %s33
      %s20 = sphi 0, %s29
      %s21 = sphi 0, %s18
      %s22 = sphi 0, %s19
      %s23 = sphi 0, %s20
      %s24 = sphi 0, %s21
      %s25 = sphi 0, %s22
      %s26 = sphi 0, %s23
      %s42 = sphi 0, %s44
      %s45 = sphi 0, %s42
      %s46 = sphi 0, %s45
      %s62 = sphi 0, %s46
      %s70 = sphi 0, %s72
      %s73 = sphi 0, %s70
      %s74 = sphi 0, %s73
      %s90 = sphi 0, %s74
      %s98 = sphi 0, %s100
      %s101 = sphi 0, %s98
      %s102 = sphi 0, %s101
      %s118 = sphi 0, %s102
    $region4: #{tpu_custom_call.1} parent=1 // loop_header_branch
      %14 = sbr.rel (%p12) target = $region8
    $region5: #{tpu_custom_call.1} parent=1 // loop_body
      %s16 = ssub.s32 %s11, 1
      %s17 = ssub.s32 %s11, 2
      %s27 = sadd.s32 1, %s20
      %p28 = scmp.ge.s32.totalorder %s27, 1
      %s29 = scalar_select %p28, 0, %s27
      %s30 = sadd.s32 1, %s19
      %s31 = scalar_select %p28, %s30, %s19
      %p32 = scmp.ge.s32.totalorder %s31, 1
      %s33 = scalar_select %p32, 0, %s31
      %s34 = sadd.s32 1, %s18
      %s35 = scalar_select %p32, %s34, %s18
      %p36 = scmp.ge.s32.totalorder %s35, 2
      %s37 = scalar_select %p36, 0, %s35
      %s38 = ssub.s32 %s18, %s37
      %s39 = ssub.s32 %s20, %s29
      %s40 = sor.u32 %s38, %s39
      %p41 = scmp.eq.s32.totalorder %s40, 0
      %s43 = sadd.s32 %s42, 1
      %s44 = scalar_select %p41, %s42, %s43
      %p47 = pneg %p41
      %p48 = scmp.eq.s32.totalorder %s11, 1
      %p49 = por %p47, %p48
      %p50 = scmp.ne.s32.totalorder %s42, %s45
      %p51 = scmp.eq.s32.totalorder %s11, 0
      %p52 = por %p50, %p51
      %p53 = scmp.ne.s32.totalorder %s42, %s45
      %p54 = scmp.eq.s32.totalorder %s16, 1
      %p55 = por %p53, %p54
      %p56 = scmp.ne.s32.totalorder %s45, %s46
      %p57 = scmp.eq.s32.totalorder %s16, 0
      %p58 = por %p56, %p57
      %p59 = scmp.ne.s32.totalorder %s45, %s46
      %p60 = scmp.eq.s32.totalorder %s17, 1
      %p61 = por %p59, %p60
      %p63 = scmp.ne.s32.totalorder %s46, %s62
      %p64 = scmp.eq.s32.totalorder %s17, 0
      %p65 = por %p63, %p64
      %s66 = ssub.s32 %s18, %s37
      %s67 = ssub.s32 %s19, %s33
      %s68 = sor.u32 %s66, %s67
      %p69 = scmp.eq.s32.totalorder %s68, 0
      %s71 = sadd.s32 %s70, 1
      %s72 = scalar_select %p69, %s70, %s71
      %p75 = pneg %p69
      %p76 = scmp.eq.s32.totalorder %s11, 1
      %p77 = por %p75, %p76
      %p78 = scmp.ne.s32.totalorder %s70, %s73
      %p79 = scmp.eq.s32.totalorder %s11, 0
      %p80 = por %p78, %p79
      %p81 = scmp.ne.s32.totalorder %s70, %s73
      %p82 = scmp.eq.s32.totalorder %s16, 1
      %p83 = por %p81, %p82
      %p84 = scmp.ne.s32.totalorder %s73, %s74
      %p85 = scmp.eq.s32.totalorder %s16, 0
      %p86 = por %p84, %p85
      %p87 = scmp.ne.s32.totalorder %s73, %s74
      %p88 = scmp.eq.s32.totalorder %s17, 1
      %p89 = por %p87, %p88
      %p91 = scmp.ne.s32.totalorder %s74, %s90
      %p92 = scmp.eq.s32.totalorder %s17, 0
      %p93 = por %p91, %p92
      %s94 = ssub.s32 %s18, %s37
      %s95 = ssub.s32 %s19, %s33
      %s96 = sor.u32 %s94, %s95
      %p97 = scmp.eq.s32.totalorder %s96, 0
      %s99 = sadd.s32 %s98, 1
      %s100 = scalar_select %p97, %s98, %s99
      %p103 = pneg %p97
      %p104 = scmp.eq.s32.totalorder %s11, 1
      %p105 = por %p103, %p104
      %p106 = scmp.ne.s32.totalorder %s98, %s101
      %p107 = scmp.eq.s32.totalorder %s11, 0
      %p108 = por %p106, %p107
      %p109 = scmp.ne.s32.totalorder %s98, %s101
      %p110 = scmp.eq.s32.totalorder %s16, 1
      %p111 = por %p109, %p110
      %p112 = scmp.ne.s32.totalorder %s101, %s102
      %p113 = scmp.eq.s32.totalorder %s16, 0
      %p114 = por %p112, %p113
      %p115 = scmp.ne.s32.totalorder %s101, %s102
      %p116 = scmp.eq.s32.totalorder %s17, 1
      %p117 = por %p115, %p116
      %p119 = scmp.ne.s32.totalorder %s102, %s118
      %p120 = scmp.eq.s32.totalorder %s17, 0
      %p121 = por %p119, %p120
      %p122 = scmp.le.s32.totalorder 1, %s11
      %p123 = scmp.lt.s32.totalorder %s11, 3
      %p124 = pnand %p122, %p123
      %p125 = pneg %p124
      // Predicated region
      $region9: #{tpu_custom_call.1} parent=5 // pred_check
        _
      $region10: #{tpu_custom_call.1} parent=5 // pred_check_branch
        %127 = sbr.rel (%p124) target = $region12
      $region11: #{tpu_custom_call.1} parent=5 // pred_region
        %s128 = ssub.s32 %s11, 1
      $region12: #{tpu_custom_call.1} parent=5 // pred_fallthru
        _
      %p129 = scmp.lt.s32.totalorder %s11, 2
      // Predicated region
      $region13: #{tpu_custom_call.1} parent=5 // pred_check
        %p130 = pneg %p129
      $region14: #{tpu_custom_call.1} parent=5 // pred_check_branch
        %132 = sbr.rel (%p130) target = $region16
      $region15: #{tpu_custom_call.1} parent=5 // pred_region
        // Predicated region
        $region17: #{tpu_custom_call.1} parent=15 // pred_check
          %p133 = pneg %p52
        $region18: #{tpu_custom_call.1} parent=15 // pred_check_branch
          %135 = sbr.rel (%p133) target = $region20
        $region19: #{tpu_custom_call.1} parent=15 // pred_region
          %s136 = smul.u32 16, %s20
          %p137 = scmp.lt.s32.totalorder %s18, 1
          %s138 = scalar_select %p137, %s18, 1
          %p139 = scmp.lt.s32.totalorder %s136, 15
          %s140 = scalar_select %p139, %s136, 15
          %s141 = smul.addr %s138, 16
          %s142 = sadd.s32 %s140, %s141
          %s143 = smul.addr %s142, 8
          %s144 = scalar_lea.vmem %s0, %s143
          %s145 = smul.u32 16, %s20
        $region20: #{tpu_custom_call.1} parent=15 // pred_fallthru
          _
        // Predicated region
        $region21: #{tpu_custom_call.1} parent=15 // pred_check
          %p146 = pneg %p80
        $region22: #{tpu_custom_call.1} parent=15 // pred_check_branch
          %148 = sbr.rel (%p146) target = $region24
        $region23: #{tpu_custom_call.1} parent=15 // pred_region
          %s149 = smul.u32 16, %s19
          %p150 = scmp.lt.s32.totalorder %s18, 1
          %s151 = scalar_select %p150, %s18, 1
          %p152 = scmp.lt.s32.totalorder %s149, 15
          %s153 = scalar_select %p152, %s149, 15
          %s154 = smul.addr %s151, 16
          %s155 = sadd.s32 %s153, %s154
          %s156 = smul.addr %s155, 8
          %s157 = scalar_lea.vmem %s1, %s156
          %s158 = smul.u32 16, %s19
        $region24: #{tpu_custom_call.1} parent=15 // pred_fallthru
          _
      $region16: #{tpu_custom_call.1} parent=5 // pred_fallthru
        _
      %p159 = scmp.le.s32.totalorder 1, %s11
      %p160 = scmp.lt.s32.totalorder %s11, 3
      %p161 = pnand %p159, %p160
      %p162 = pneg %p161
      // Predicated region
      $region25: #{tpu_custom_call.1} parent=5 // pred_check
        _
      $region26: #{tpu_custom_call.1} parent=5 // pred_check_branch
        %164 = sbr.rel (%p161) target = $region28
      $region27: #{tpu_custom_call.1} parent=5 // pred_region
        %s165 = ssub.s32 %s11, 1
        %s166 = smul.u32 16, %s23
        %p167 = scmp.lt.s32.totalorder %s21, 1
        %s168 = scalar_select %p167, %s21, 1
        %p169 = scmp.lt.s32.totalorder %s166, 15
        %s170 = scalar_select %p169, %s166, 15
        %s171 = smul.addr %s168, 16
        %s172 = sadd.s32 %s170, %s171
        %s173 = smul.addr %s172, 8
        %s174 = scalar_lea.vmem %s0, %s173
        %p175 = pneg %p58
        %p176 = pneg %p55
        %s177 = smul.u32 16, %s22
        %p178 = scmp.lt.s32.totalorder %s21, 1
        %s179 = scalar_select %p178, %s21, 1
        %p180 = scmp.lt.s32.totalorder %s177, 15
        %s181 = scalar_select %p180, %s177, 15
        %s182 = smul.addr %s179, 16
        %s183 = sadd.s32 %s181, %s182
        %s184 = smul.addr %s183, 8
        %s185 = scalar_lea.vmem %s1, %s184
        %p186 = pneg %p86
        %p187 = pneg %p83
        %p188 = pneg %p114
        %p189 = pneg %p111
        %s190 = sand.u32 %s101, 1
        %s191 = scalar_lea.sflag [#allocation5], %s190
        %s192 = sand.u32 %s101, 1
        %s193 = scalar_lea.vmem [#allocation4], %s192
        %s194 = smul.u32 16, %s23
        %p195 = scmp.lt.s32.totalorder %s21, 1
        %s196 = scalar_select %p195, %s21, 1
        %p197 = scmp.lt.s32.totalorder %s194, 15
        %s198 = scalar_select %p197, %s194, 15
        %s199 = smul.addr %s196, 16
        %s200 = sadd.s32 %s198, %s199
        %s201 = smul.addr %s200, 8
        %s202 = scalar_lea.vmem %s0, %s201
        %s203 = smul.u32 16, %s23
        %s204 = smul.u32 16, %s22
        %p205 = scmp.lt.s32.totalorder %s21, 1
        %s206 = scalar_select %p205, %s21, 1
        %p207 = scmp.lt.s32.totalorder %s204, 15
        %s208 = scalar_select %p207, %s204, 15
        %s209 = smul.addr %s206, 16
        %s210 = sadd.s32 %s208, %s209
        %s211 = smul.addr %s210, 8
        %s212 = scalar_lea.vmem %s1, %s211
        %s213 = smul.u32 16, %s22
        %p214 = scmp.eq.s32.totalorder %s23, 0
        // Predicated region
        $region29: #{tpu_custom_call.1} parent=27 // pred_check
          %p215 = pneg %p214
        $region30: #{tpu_custom_call.1} parent=27 // pred_check_branch
          %217 = sbr.rel (%p215) target = $region32
        $region31: #{tpu_custom_call.1} parent=27 // pred_region
          %218 = vst [vmem:[#allocation2] sm:$0x1] inf
          %219 = vst [vmem:[#allocation3] sm:$0x1] inf
        $region32: #{tpu_custom_call.1} parent=27 // pred_fallthru
          _
        %v220 = vld [vmem:[%s202] sm:$0xff]
        %v221 = vld [vmem:[%s202 + $0x8] sm:$0xff]
        %v222 = vld [vmem:[%s202 + $0x10] sm:$0xff]
        %v223 = vld [vmem:[%s202 + $0x18] sm:$0xff]
        %v224 = vld [vmem:[%s202 + $0x20] sm:$0xff]
        %v225 = vld [vmem:[%s202 + $0x28] sm:$0xff]
        %v226 = vld [vmem:[%s202 + $0x30] sm:$0xff]
        %v227 = vld [vmem:[%s202 + $0x38] sm:$0xff]
        %v228 = vld [vmem:[%s202 + $0x40] sm:$0xff]
        %v229 = vld [vmem:[%s202 + $0x48] sm:$0xff]
        %v230 = vld [vmem:[%s202 + $0x50] sm:$0xff]
        %v231 = vld [vmem:[%s202 + $0x58] sm:$0xff]
        %v232 = vld [vmem:[%s202 + $0x60] sm:$0xff]
        %v233 = vld [vmem:[%s202 + $0x68] sm:$0xff]
        %v234 = vld [vmem:[%s202 + $0x70] sm:$0xff]
        %v235 = vld [vmem:[%s202 + $0x78] sm:$0xff]
        %v236 = vld [vmem:[%s212] sm:$0xff]
        %v237 = vld [vmem:[%s212 + $0x8] sm:$0xff]
        %v238 = vld [vmem:[%s212 + $0x10] sm:$0xff]
        %v239 = vld [vmem:[%s212 + $0x18] sm:$0xff]
        %v240 = vld [vmem:[%s212 + $0x20] sm:$0xff]
        %v241 = vld [vmem:[%s212 + $0x28] sm:$0xff]
        %v242 = vld [vmem:[%s212 + $0x30] sm:$0xff]
        %v243 = vld [vmem:[%s212 + $0x38] sm:$0xff]
        %v244 = vld [vmem:[%s212 + $0x40] sm:$0xff]
        %v245 = vld [vmem:[%s212 + $0x48] sm:$0xff]
        %v246 = vld [vmem:[%s212 + $0x50] sm:$0xff]
        %v247 = vld [vmem:[%s212 + $0x58] sm:$0xff]
        %v248 = vld [vmem:[%s212 + $0x60] sm:$0xff]
        %v249 = vld [vmem:[%s212 + $0x68] sm:$0xff]
        %v250 = vld [vmem:[%s212 + $0x70] sm:$0xff]
        %v251 = vld [vmem:[%s212 + $0x78] sm:$0xff]
        %vm252 = vcmask 80896
        %v254 = vsel %vm252, %v220, 0
        %v257 = vsel %vm252, %v221, 0
        %v260 = vsel %vm252, %v222, 0
        %v263 = vsel %vm252, %v223, 0
        %v266 = vsel %vm252, %v224, 0
        %v269 = vsel %vm252, %v225, 0
        %v272 = vsel %vm252, %v226, 0
        %v275 = vsel %vm252, %v227, 0
        %v278 = vsel %vm252, %v228, 0
        %v281 = vsel %vm252, %v229, 0
        %v284 = vsel %vm252, %v230, 0
        %v287 = vsel %vm252, %v231, 0
        %v290 = vsel %vm252, %v232, 0
        %v293 = vsel %vm252, %v233, 0
        %v296 = vsel %vm252, %v234, 0
        %v299 = vsel %vm252, %v235, 0
        %v302 = vsel %vm252, %v236, 0
        %v305 = vsel %vm252, %v237, 0
        %v308 = vsel %vm252, %v238, 0
        %v311 = vsel %vm252, %v239, 0
        %v314 = vsel %vm252, %v240, 0
        %v317 = vsel %vm252, %v241, 0
        %v320 = vsel %vm252, %v242, 0
        %v323 = vsel %vm252, %v243, 0
        %v326 = vsel %vm252, %v244, 0
        %v329 = vsel %vm252, %v245, 0
        %v332 = vsel %vm252, %v246, 0
        %v335 = vsel %vm252, %v247, 0
        %v338 = vsel %vm252, %v248, 0
        %v341 = vsel %vm252, %v249, 0
        %v344 = vsel %vm252, %v250, 0
        %v347 = vsel %vm252, %v251, 0
        %349 = vmatpush.xpose.msra.mxu0 %v347
        %350 = vmatpush.xpose.msra.mxu0 %v344
        %351 = vmatpush.xpose.msra.mxu0 %v341
        %352 = vmatpush.xpose.msra.mxu0 %v338
        %353 = vmatpush.xpose.msra.mxu0 %v335
        %354 = vmatpush.xpose.msra.mxu0 %v332
        %355 = vmatpush.xpose.msra.mxu0 %v329
        %356 = vmatpush.xpose.msra.mxu0 %v326
        %357 = vmatpush.xpose.msra.mxu0 %v323
        %358 = vmatpush.xpose.msra.mxu0 %v320
        %359 = vmatpush.xpose.msra.mxu0 %v317
        %360 = vmatpush.xpose.msra.mxu0 %v314
        %361 = vmatpush.xpose.msra.mxu0 %v311
        %362 = vmatpush.xpose.msra.mxu0 %v308
        %363 = vmatpush.xpose.msra.mxu0 %v305
        %364 = vmatpush.xpose.msra.mxu0 %v302
        %365 = vmatmul.f32.gmra.mxu0 %v254
        %v366 = vpop.f32.mrf.mxu0
        %v367 = vadd.f32 0.0, %v366
        %368 = vmatmul.f32.gmra.mxu0 %v257
        %v369 = vpop.f32.mrf.mxu0
        %v370 = vadd.f32 0.0, %v369
        %371 = vmatmul.f32.gmra.mxu0 %v260
        %v372 = vpop.f32.mrf.mxu0
        %v373 = vadd.f32 0.0, %v372
        %374 = vmatmul.f32.gmra.mxu0 %v263
        %v375 = vpop.f32.mrf.mxu0
        %v376 = vadd.f32 0.0, %v375
        %377 = vmatmul.f32.gmra.mxu0 %v266
        %v378 = vpop.f32.mrf.mxu0
        %v379 = vadd.f32 0.0, %v378
        %380 = vmatmul.f32.gmra.mxu0 %v269
        %v381 = vpop.f32.mrf.mxu0
        %v382 = vadd.f32 0.0, %v381
        %383 = vmatmul.f32.gmra.mxu0 %v272
        %v384 = vpop.f32.mrf.mxu0
        %v385 = vadd.f32 0.0, %v384
        %386 = vmatmul.f32.gmra.mxu0 %v275
        %v387 = vpop.f32.mrf.mxu0
        %v388 = vadd.f32 0.0, %v387
        %389 = vmatmul.f32.gmra.mxu0 %v278
        %v390 = vpop.f32.mrf.mxu0
        %v391 = vadd.f32 0.0, %v390
        %392 = vmatmul.f32.gmra.mxu0 %v281
        %v393 = vpop.f32.mrf.mxu0
        %v394 = vadd.f32 0.0, %v393
        %395 = vmatmul.f32.gmra.mxu0 %v284
        %v396 = vpop.f32.mrf.mxu0
        %v397 = vadd.f32 0.0, %v396
        %398 = vmatmul.f32.gmra.mxu0 %v287
        %v399 = vpop.f32.mrf.mxu0
        %v400 = vadd.f32 0.0, %v399
        %401 = vmatmul.f32.gmra.mxu0 %v290
        %v402 = vpop.f32.mrf.mxu0
        %v403 = vadd.f32 0.0, %v402
        %404 = vmatmul.f32.gmra.mxu0 %v293
        %v405 = vpop.f32.mrf.mxu0
        %v406 = vadd.f32 0.0, %v405
        %407 = vmatmul.f32.gmra.mxu0 %v296
        %v408 = vpop.f32.mrf.mxu0
        %v409 = vadd.f32 0.0, %v408
        %410 = vmatmul.f32.gmra.mxu0 %v299
        %v411 = vpop.f32.mrf.mxu0
        %v412 = vadd.f32 0.0, %v411
        %413 = vdwg.mxu0
        %s414 = smul.u32 %s23, 128
        %v415 = vlaneseq
        %v416 = vshrl.u32 %v415, 7
        %v417 = vadd.s32 %v416, 8
        %v418 = vadd.s32 %v416, 16
        %v419 = vadd.s32 %v416, 24
        %v420 = vadd.s32 %v416, 32
        %v421 = vadd.s32 %v416, 40
        %v422 = vadd.s32 %v416, 48
        %v423 = vadd.s32 %v416, 56
        %v424 = vadd.s32 %v416, 64
        %v425 = vadd.s32 %v416, 72
        %v426 = vadd.s32 %v416, 80
        %v427 = vadd.s32 %v416, 88
        %v428 = vadd.s32 %v416, 96
        %v429 = vadd.s32 %v416, 104
        %v430 = vadd.s32 %v416, 112
        %v431 = vadd.s32 %v416, 120
        %v432 = vstv %s414
        %v433 = vadd.s32 %v432, %v416
        %v434 = vadd.s32 %v432, %v417
        %v435 = vadd.s32 %v432, %v418
        %v436 = vadd.s32 %v432, %v419
        %v437 = vadd.s32 %v432, %v420
        %v438 = vadd.s32 %v432, %v421
        %v439 = vadd.s32 %v432, %v422
        %v440 = vadd.s32 %v432, %v423
        %v441 = vadd.s32 %v432, %v424
        %v442 = vadd.s32 %v432, %v425
        %v443 = vadd.s32 %v432, %v426
        %v444 = vadd.s32 %v432, %v427
        %v445 = vadd.s32 %v432, %v428
        %v446 = vadd.s32 %v432, %v429
        %v447 = vadd.s32 %v432, %v430
        %v448 = vadd.s32 %v432, %v431
        %s449 = smul.u32 %s22, 128
        %v450 = vlaneseq
        %v451 = vand.u32 %v450, 127
        %v452 = vstv %s449
        %v453 = vadd.s32 %v452, %v451
        %vm454 = vcmp.eq.s32.totalorder %v433, %v453
        %vm455 = vcmp.eq.s32.totalorder %v434, %v453
        %vm456 = vcmp.eq.s32.totalorder %v435, %v453
        %vm457 = vcmp.eq.s32.totalorder %v436, %v453
        %vm458 = vcmp.eq.s32.totalorder %v437, %v453
        %vm459 = vcmp.eq.s32.totalorder %v438, %v453
        %vm460 = vcmp.eq.s32.totalorder %v439, %v453
        %vm461 = vcmp.eq.s32.totalorder %v440, %v453
        %vm462 = vcmp.eq.s32.totalorder %v441, %v453
        %vm463 = vcmp.eq.s32.totalorder %v442, %v453
        %vm464 = vcmp.eq.s32.totalorder %v443, %v453
        %vm465 = vcmp.eq.s32.totalorder %v444, %v453
        %vm466 = vcmp.eq.s32.totalorder %v445, %v453
        %vm467 = vcmp.eq.s32.totalorder %v446, %v453
        %vm468 = vcmp.eq.s32.totalorder %v447, %v453
        %vm469 = vcmp.eq.s32.totalorder %v448, %v453
        %v470 = vsel %vm454, inf, %v367
        %v471 = vsel %vm455, inf, %v370
        %v472 = vsel %vm456, inf, %v373
        %v473 = vsel %vm457, inf, %v376
        %v474 = vsel %vm458, inf, %v379
        %v475 = vsel %vm459, inf, %v382
        %v476 = vsel %vm460, inf, %v385
        %v477 = vsel %vm461, inf, %v388
        %v478 = vsel %vm462, inf, %v391
        %v479 = vsel %vm463, inf, %v394
        %v480 = vsel %vm464, inf, %v397
        %v481 = vsel %vm465, inf, %v400
        %v482 = vsel %vm466, inf, %v403
        %v483 = vsel %vm467, inf, %v406
        %v484 = vsel %vm468, inf, %v409
        %v485 = vsel %vm469, inf, %v412
        %v486 = vmin.f32 %v470, %v474
        %v487 = vmin.f32 %v471, %v475
        %v488 = vmin.f32 %v472, %v476
        %v489 = vmin.f32 %v473, %v477
        %v490 = vmin.f32 %v486, %v478
        %v491 = vmin.f32 %v487, %v479
        %v492 = vmin.f32 %v488, %v480
        %v493 = vmin.f32 %v489, %v481
        %v494 = vmin.f32 %v490, %v482
        %v495 = vmin.f32 %v491, %v483
        %v496 = vmin.f32 %v492, %v484
        %v497 = vmin.f32 %v493, %v485
        %v498 = vmin.f32 %v494, %v495
        %v499 = vmin.f32 %v496, %v497
        %v500 = vmin.f32 %v498, %v499
        %v501 = vrot.slane %v500, 4
        %v502 = vmin.f32 %v500, %v501
        %v503 = vrot.slane %v502, 2
        %v504 = vmin.f32 %v502, %v503
        %v505 = vrot.slane %v504, 1
        %v506 = vmin.f32 %v504, %v505
        %vm507 = vcmp.eq.f32.partialorder %v470, %v506
        %vm508 = vcmp.eq.f32.partialorder %v471, %v506
        %vm509 = vcmp.eq.f32.partialorder %v472, %v506
        %vm510 = vcmp.eq.f32.partialorder %v473, %v506
        %vm511 = vcmp.eq.f32.partialorder %v474, %v506
        %vm512 = vcmp.eq.f32.partialorder %v475, %v506
        %vm513 = vcmp.eq.f32.partialorder %v476, %v506
        %vm514 = vcmp.eq.f32.partialorder %v477, %v506
        %vm515 = vcmp.eq.f32.partialorder %v478, %v506
        %vm516 = vcmp.eq.f32.partialorder %v479, %v506
        %vm517 = vcmp.eq.f32.partialorder %v480, %v506
        %vm518 = vcmp.eq.f32.partialorder %v481, %v506
        %vm519 = vcmp.eq.f32.partialorder %v482, %v506
        %vm520 = vcmp.eq.f32.partialorder %v483, %v506
        %vm521 = vcmp.eq.f32.partialorder %v484, %v506
        %vm522 = vcmp.eq.f32.partialorder %v485, %v506
        %v523 = vsel %vm507, 1, 0
        %v524 = vsel %vm508, 1, 0
        %v525 = vsel %vm509, 1, 0
        %v526 = vsel %vm510, 1, 0
        %v527 = vsel %vm511, 1, 0
        %v528 = vsel %vm512, 1, 0
        %v529 = vsel %vm513, 1, 0
        %v530 = vsel %vm514, 1, 0
        %v531 = vsel %vm515, 1, 0
        %v532 = vsel %vm516, 1, 0
        %v533 = vsel %vm517, 1, 0
        %v534 = vsel %vm518, 1, 0
        %v535 = vsel %vm519, 1, 0
        %v536 = vsel %vm520, 1, 0
        %v537 = vsel %vm521, 1, 0
        %v538 = vsel %vm522, 1, 0
        %v539 = vcvt.s32.f32 %v523
        %v540 = vcvt.s32.f32 %v524
        %v541 = vcvt.s32.f32 %v525
        %v542 = vcvt.s32.f32 %v526
        %v543 = vcvt.s32.f32 %v527
        %v544 = vcvt.s32.f32 %v528
        %v545 = vcvt.s32.f32 %v529
        %v546 = vcvt.s32.f32 %v530
        %v547 = vcvt.s32.f32 %v531
        %v548 = vcvt.s32.f32 %v532
        %v549 = vcvt.s32.f32 %v533
        %v550 = vcvt.s32.f32 %v534
        %v551 = vcvt.s32.f32 %v535
        %v552 = vcvt.s32.f32 %v536
        %v553 = vcvt.s32.f32 %v537
        %v554 = vcvt.s32.f32 %v538
        %v555 = vadd.f32 %v539, %v540
        %v556 = vadd.f32 %v555, %v541
        %v557 = vadd.f32 %v556, %v542
        %v558 = vadd.f32 %v557, %v543
        %v559 = vadd.f32 %v558, %v544
        %v560 = vadd.f32 %v559, %v545
        %v561 = vadd.f32 %v560, %v546
        %v562 = vadd.f32 %v561, %v547
        %v563 = vadd.f32 %v562, %v548
        %v564 = vadd.f32 %v563, %v549
        %v565 = vadd.f32 %v564, %v550
        %v566 = vadd.f32 %v565, %v551
        %v567 = vadd.f32 %v566, %v552
        %v568 = vadd.f32 %v567, %v553
        %v569 = vadd.f32 %v568, %v554
        %v570 = vrot.slane %v569, 4
        %v571 = vadd.f32 %v569, %v570
        %v572 = vrot.slane %v571, 2
        %v573 = vadd.f32 %v571, %v572
        %v574 = vrot.slane %v573, 1
        %v575 = vadd.f32 %v573, %v574
        %v576 = vsel %vm507, inf, %v470
        %v577 = vsel %vm508, inf, %v471
        %v578 = vsel %vm509, inf, %v472
        %v579 = vsel %vm510, inf, %v473
        %v580 = vsel %vm511, inf, %v474
        %v581 = vsel %vm512, inf, %v475
        %v582 = vsel %vm513, inf, %v476
        %v583 = vsel %vm514, inf, %v477
        %v584 = vsel %vm515, inf, %v478
        %v585 = vsel %vm516, inf, %v479
        %v586 = vsel %vm517, inf, %v480
        %v587 = vsel %vm518, inf, %v481
        %v588 = vsel %vm519, inf, %v482
        %v589 = vsel %vm520, inf, %v483
        %v590 = vsel %vm521, inf, %v484
        %v591 = vsel %vm522, inf, %v485
        %v592 = vmin.f32 %v576, %v580
        %v593 = vmin.f32 %v577, %v581
        %v594 = vmin.f32 %v578, %v582
        %v595 = vmin.f32 %v579, %v583
        %v596 = vmin.f32 %v592, %v584
        %v597 = vmin.f32 %v593, %v585
        %v598 = vmin.f32 %v594, %v586
        %v599 = vmin.f32 %v595, %v587
        %v600 = vmin.f32 %v596, %v588
        %v601 = vmin.f32 %v597, %v589
        %v602 = vmin.f32 %v598, %v590
        %v603 = vmin.f32 %v599, %v591
        %v604 = vmin.f32 %v600, %v601
        %v605 = vmin.f32 %v602, %v603
        %v606 = vmin.f32 %v604, %v605
        %v607 = vrot.slane %v606, 4
        %v608 = vmin.f32 %v606, %v607
        %v609 = vrot.slane %v608, 2
        %v610 = vmin.f32 %v608, %v609
        %v611 = vrot.slane %v610, 1
        %v612 = vmin.f32 %v610, %v611
        %vm613 = vcmp.gt.f32.partialorder %v575, 1.5
        %v614 = vsel %vm613, %v506, %v612
        %v615 = vld [vmem:[#allocation2] sm:$0x1]
        %v616 = vld [vmem:[#allocation3] sm:$0x1]
        %v617 = vmin.f32 %v615, %v506
        %v618 = vmax.f32 %v615, %v506
        %v619 = vmin.f32 %v616, %v614
        %v620 = vmin.f32 %v618, %v619
        %621 = vst [vmem:[#allocation2] sm:$0x1] %v617
        %622 = vst [vmem:[#allocation3] sm:$0x1] %v620
        // Predicated region
        $region33: #{tpu_custom_call.1} parent=27 // pred_check
          %p623 = pneg %p214
        $region34: #{tpu_custom_call.1} parent=27 // pred_check_branch
          %625 = sbr.rel (%p623) target = $region36
        $region35: #{tpu_custom_call.1} parent=27 // pred_region
          %v626 = vmax.f32 %v617, 0.0
          %v627 = vmax.f32 %v620, 0.0
          %v628 = vmax.f32 %v626, 1e-30
          %v629 = vrcp.pop %v628
          %v630 = vmul.f32 %v628, %v629
          %v631 = vsub.f32 1.0, %v630
          %v632 = vmul.f32 %v629, %v631
          %v633 = vadd.f32 %v629, %v632
          %vm634 = vweird.f32 %v628
          %vm635 = vweird.f32 %v629
          %vm636 = vmor %vm634, %vm635
          %v637 = vsel %vm636, %v629, %v633
          %v638 = vand.u32 2147483647, %v628
          %vm639 = vcmp.eq.f32.partialorder %v638, 8.507059e+37
          %v640 = vand.u32 %v628, 2147483648
          %v641 = vor.u32 1.1754944e-38, %v640
          %v642 = vsel %vm639, %v641, %v637
          %v643 = vmul.f32 %v627, %v642
          %644 = vst [vmem:[%s193] sm:$0x1] %v643
        $region36: #{tpu_custom_call.1} parent=27 // pred_fallthru
          _
        %s645 = sand.u32 %s101, 1
        %s646 = scalar_lea.sflag [#allocation5], %s645
        %s647 = sand.u32 %s101, 1
        %s648 = scalar_lea.vmem [#allocation4], %s647
        // Predicated region
        $region37: #{tpu_custom_call.1} parent=27 // pred_check
          %p649 = pneg %p111
        $region38: #{tpu_custom_call.1} parent=27 // pred_check_branch
          %651 = sbr.rel (%p649) target = $region40
        $region39: #{tpu_custom_call.1} parent=27 // pred_region
          %653 = vsyncadd %s646, 0
          %s654 = sadd.s32 %s22, %s21
          %s655 = scalar_lea.hbm %s2, %s654
          %s657 = sshll.u32 %s648, 4
          %s658 = int_to_ptr.vmem [resolvable:$true] %s657
          %s659 = sshll.u32 %s655, 4
          %s660 = int_to_ptr.hbm [resolvable:$true] %s659
          %662 = dma.vmem_to_hbm [thread:$0]  %s658, 16, %s660, %s646
        $region40: #{tpu_custom_call.1} parent=27 // pred_fallthru
          _
      $region28: #{tpu_custom_call.1} parent=5 // pred_fallthru
        _
      %p663 = scmp.le.s32.totalorder 2, %s11
      // Predicated region
      $region41: #{tpu_custom_call.1} parent=5 // pred_check
        %p664 = pneg %p663
      $region42: #{tpu_custom_call.1} parent=5 // pred_check_branch
        %666 = sbr.rel (%p664) target = $region44
      $region43: #{tpu_custom_call.1} parent=5 // pred_region
        %s667 = ssub.s32 %s11, 2
        // Predicated region
        $region45: #{tpu_custom_call.1} parent=43 // pred_check
          %p668 = pneg %p117
        $region46: #{tpu_custom_call.1} parent=43 // pred_check_branch
          %670 = sbr.rel (%p668) target = $region48
        $region47: #{tpu_custom_call.1} parent=43 // pred_region
          %s671 = sand.u32 %s102, 1
          %s672 = scalar_lea.sflag [#allocation5], %s671
          %s673 = sand.u32 %s102, 1
          %s674 = scalar_lea.vmem [#allocation4], %s673
          %676 = dma.done %s672, 16
        $region48: #{tpu_custom_call.1} parent=43 // pred_fallthru
          _
      $region44: #{tpu_custom_call.1} parent=5 // pred_fallthru
        _
    $region6: #{tpu_custom_call.1} parent=1 // loop_footer
      %s15 = sadd.s32 1, %s11
    $region7: #{tpu_custom_call.1} parent=1 // loop_footer_branch
      %10 = sbr.rel target = $region3
    $region8: #{tpu_custom_call.1} parent=1 // loop_exit
      _
    %677 = vsyncpa [#allocation5], 1
    %s678 = scalar_lea.sflag [#allocation5], 1
    %679 = vsyncpa %s678, 1

</llo_original>
